<compile_context>
chip_gen: v5e
topology: v5e:2x2
jax: 0.10.0
libtpu: 0.0.40
codegen_flags: <defaults>
</compile_context>

<pallas_src>
import jax
import jax.numpy as jnp
from jax.experimental import pallas as pl
from jax.experimental.pallas import tpu as pltpu


def _round_up(x, m):
    return (x + m - 1) // m * m


def _distmult_kernel(s_ref, p_ref, o_ref, out_ref):
    # s/p/o tiles: (bb, E) -- batch rows on sublanes, embedding dim on lanes.
    # out tile:    (bb, 1) -- one score per row (lse-style keepdims store; the
    #              reduce result is naturally one scalar per sublane, so this
    #              avoids any in-kernel relayout).
    s = s_ref[...].astype(jnp.float32)   # explicit upcast: f32 accumulation,
    p = p_ref[...].astype(jnp.float32)   # works for bf16 tables on v5e too.
    o = o_ref[...].astype(jnp.float32)
    out_ref[...] = jnp.sum(s * p * o, axis=1, keepdims=True)


def distmult_scores(s_emb, p_emb, o_emb, *, block_b=1024):
    """scores[b] = sum_e s_emb[b,e] * p_emb[b,e] * o_emb[b,e] (f32 accumulate).

    Inputs are (B, E) row-major gathered embedding slabs.
    """
    B, E = s_emb.shape
    assert p_emb.shape == (B, E) and o_emb.shape == (B, E)

    itemsize = max(jnp.dtype(s_emb.dtype).itemsize,
                   jnp.dtype(p_emb.dtype).itemsize,
                   jnp.dtype(o_emb.dtype).itemsize)
    # VMEM working set per batch row: 3 inputs x 2 pipeline buffers, last dim
    # padded to 128 lanes, plus the (bb, 1) double-buffered f32 output tile.
    e_lanes = _round_up(E, 128)
    per_row_bytes = 3 * 2 * e_lanes * itemsize + 2 * 128 * 4
    vmem_budget = 24 * 1024 * 1024  # fits the scoped-VMEM default everywhere
    max_bb = max(8, (vmem_budget // per_row_bytes) // 8 * 8)

    bb = min(block_b, _round_up(B, 8), max_bb)
    bb = max(8, (bb // 8) * 8)

    B_pad = _round_up(B, bb)
    if B_pad != B:
        pad = ((0, B_pad - B), (0, 0))
        s_emb = jnp.pad(s_emb, pad)
        p_emb = jnp.pad(p_emb, pad)
        o_emb = jnp.pad(o_emb, pad)

    emb_spec = pl.BlockSpec((bb, E), lambda i: (i, 0))
    # NOTE: default double-buffering is enough for a 3-read/1-tiny-write
    # streaming kernel; bump pipeline_mode=pl.Buffered(3) only if a profile
    # shows exposed DMA.
    out = pl.pallas_call(
        _distmult_kernel,
        grid=(B_pad // bb,),
        in_specs=[emb_spec, emb_spec, emb_spec],
        out_specs=pl.BlockSpec((bb, 1), lambda i: (i, 0)),
        out_shape=jax.ShapeDtypeStruct((B_pad, 1), jnp.float32),
        compiler_params=pltpu.CompilerParams(
            dimension_semantics=("parallel",)),
    )(s_emb, p_emb, o_emb)
    return out[:B, 0]


class DistMultPallas:
    """DistMult decoder: forward(si, pi, oi, nodes, relations) -> scores.

    Covers every branch of the PyTorch forward: the "singles" matmul branches
    are mathematically identical to broadcasting the index tensors and running
    the elementwise (s * p * o).sum(-1) path, which is what the kernel does.
    Embedding tables may be float32 or bfloat16; accumulation is float32.
    """

    def __init__(self, e):
        self.e = e

    def __call__(self, si, pi, oi, nodes, relations, *, block_b=1024):
        si = jnp.asarray(si)
        pi = jnp.asarray(pi)
        oi = jnp.asarray(oi)
        si_b, pi_b, oi_b = jnp.broadcast_arrays(si, pi, oi)
        out_shape = si_b.shape

        s_idx = si_b.reshape(-1)
        p_idx = pi_b.reshape(-1)
        o_idx = oi_b.reshape(-1)

        # Row gather stays in XLA glue (contiguous row reads); the kernel then
        # consumes the natural (B, E) slab directly -- no extra transpose pass.
        # TODO(synk): for the "singles" branches, gathering the broadcast side
        # once and using an MXU matvec would cut gather traffic ~3x; and the
        # gather itself could be fused into the kernel via scalar-prefetched
        # indices + per-row DMA (descriptor-bound at small E, so skipped).
        s_emb = jnp.take(nodes, s_idx, axis=0)
        p_emb = jnp.take(relations, p_idx, axis=0)
        o_emb = jnp.take(nodes, o_idx, axis=0)

        scores = distmult_scores(s_emb, p_emb, o_emb, block_b=block_b)
        out_dtype = jnp.result_type(nodes.dtype, relations.dtype)
        return scores.astype(out_dtype).reshape(out_shape)


if __name__ == "__main__":
    key = jax.random.PRNGKey(0)
    k_n, k_r, k_s, k_p, k_o, k_s2, k_p2, k_o2 = jax.random.split(key, 8)

    n, r, e, B = 64, 8, 32, 16
    nodes = jax.random.uniform(k_n, (n, e), jnp.float32, -1.0, 1.0)
    relations = jax.random.uniform(k_r, (r, e), jnp.float32, -1.0, 1.0)

    decoder = DistMultPallas(e)

    # 1) Same-shape triple-batch path: (s * p * o).sum(-1).
    si = jax.random.randint(k_s, (B,), 0, n, dtype=jnp.int32)
    pi = jax.random.randint(k_p, (B,), 0, r, dtype=jnp.int32)
    oi = jax.random.randint(k_o, (B,), 0, n, dtype=jnp.int32)
    scores = decoder(si, pi, oi, nodes, relations)
    jax.block_until_ready(scores)
    ref = jnp.sum(nodes[si] * relations[pi] * nodes[oi], axis=-1)
    assert scores.shape == (B,), scores.shape
    assert jnp.allclose(scores, ref, atol=1e-5, rtol=1e-5)

    # 2) "Singles" branch (pi/oi trailing size 1 -> torch uses the matmul path).
    si2 = jax.random.randint(k_s2, (4, 8), 0, n, dtype=jnp.int32)
    pi2 = jax.random.randint(k_p2, (4, 1), 0, r, dtype=jnp.int32)
    oi2 = jax.random.randint(k_o2, (4, 1), 0, n, dtype=jnp.int32)
    scores2 = decoder(si2, pi2, oi2, nodes, relations)
    jax.block_until_ready(scores2)
    singles = relations[pi2] * nodes[oi2]                      # (4, 1, e)
    ref2 = jnp.matmul(nodes[si2], jnp.swapaxes(singles, -1, -2))[..., 0]
    assert scores2.shape == (4, 8), scores2.shape
    assert jnp.allclose(scores2, ref2, atol=1e-5, rtol=1e-5)

    print("KERNEL_OK")
</pallas_src>

<mosaic_0001>
module attributes {stable_mosaic.version = 11 : i64} {
  func.func @_distmult_kernel(%arg0: i32, %arg1: memref<16x32xf32, #tpu.memory_space<vmem>>, %arg2: memref<16x32xf32, #tpu.memory_space<vmem>>, %arg3: memref<16x32xf32, #tpu.memory_space<vmem>>, %arg4: memref<16x1xf32, #tpu.memory_space<vmem>>) attributes {dimension_semantics = [#tpu.dimension_semantics<parallel>], iteration_bounds = array<i64: 1>, scalar_prefetch = 0 : i64, scratch_operands = 0 : i64, tpu.core_type = #tpu.core_type<tc>, window_params = [{transform_indices = @transform_0, window_bounds = array<i64: 16, 32>}, {transform_indices = @transform_1, window_bounds = array<i64: 16, 32>}, {transform_indices = @transform_2, window_bounds = array<i64: 16, 32>}, {transform_indices = @transform_3, window_bounds = array<i64: 16, 1>}]} {
    %c0 = arith.constant 0 : index
    %c0_0 = arith.constant 0 : index
    %0 = vector.load %arg1[%c0, %c0_0] : memref<16x32xf32, #tpu.memory_space<vmem>>, vector<16x32xf32>
    %c0_1 = arith.constant 0 : index
    %c0_2 = arith.constant 0 : index
    %1 = vector.load %arg2[%c0_1, %c0_2] : memref<16x32xf32, #tpu.memory_space<vmem>>, vector<16x32xf32>
    %c0_3 = arith.constant 0 : index
    %c0_4 = arith.constant 0 : index
    %2 = vector.load %arg3[%c0_3, %c0_4] : memref<16x32xf32, #tpu.memory_space<vmem>>, vector<16x32xf32>
    %3 = arith.mulf %0, %1 : vector<16x32xf32>
    %4 = arith.mulf %3, %2 : vector<16x32xf32>
    %cst = arith.constant dense<0.000000e+00> : vector<16xf32>
    %5 = vector.multi_reduction <add>, %4, %cst [1] : vector<16x32xf32> to vector<16xf32>
    %6 = vector.shape_cast %5 : vector<16xf32> to vector<16x1xf32>
    %c0_5 = arith.constant 0 : index
    %c0_6 = arith.constant 0 : index
    %7 = vector.load %arg4[%c0_5, %c0_6] : memref<16x1xf32, #tpu.memory_space<vmem>>, vector<16x1xf32>
    tpu.vector_store %arg4[%c0_5, %c0_6], %6 {strides = array<i32>} : memref<16x1xf32, #tpu.memory_space<vmem>>, vector<16x1xf32>,
    return
  }
  func.func @transform_0(%arg0: i32) -> (i32, i32) {
    %c0_i32 = arith.constant 0 : i32
    %c0_i32_0 = arith.constant 0 : i32
    return %arg0, %c0_i32 : i32, i32
  }
  func.func @transform_1(%arg0: i32) -> (i32, i32) {
    %c0_i32 = arith.constant 0 : i32
    %c0_i32_0 = arith.constant 0 : i32
    return %arg0, %c0_i32 : i32, i32
  }
  func.func @transform_2(%arg0: i32) -> (i32, i32) {
    %c0_i32 = arith.constant 0 : i32
    %c0_i32_0 = arith.constant 0 : i32
    return %arg0, %c0_i32 : i32, i32
  }
  func.func @transform_3(%arg0: i32) -> (i32, i32) {
    %c0_i32 = arith.constant 0 : i32
    %c0_i32_0 = arith.constant 0 : i32
    return %arg0, %c0_i32 : i32, i32
  }
}

</mosaic_0001>

<llo_original>
// kernel: tpu_custom_call.1
$region0: #{tpu_custom_call.1}
  #allocation0 [shape = 'u32[]', space=smem, size = 0x4, offset = 0x4, fixed_abs, tag = 'smem constant byte address 0x4 - core index']
  #allocation1 [shape = 'u32[72,128]{1,0:T(1,128)}', space=vmem, size = 0x9000, scoped, tag = 'internal scratch']
  %s0 = inlined_call_operand.hbm [shape: f32[16,32], index: 0, kind: input, shape index: {}]
  %s1 = inlined_call_operand.hbm [shape: f32[16,32], index: 1, kind: input, shape index: {}]
  %s2 = inlined_call_operand.hbm [shape: f32[16,32], index: 2, kind: input, shape index: {}]
  %s3 = inlined_call_operand.vmem [shape: f32[16,1], index: 3, kind: output, shape index: {}]
  %s4 = sld [smem:[#allocation0]]
  $region34: #{tpu_custom_call.1} parent=0
    _
  %s6 = ssub.s32 1, %s4
  %s7 = scalar_select 0, %s6, %s4
  $region1: #{tpu_custom_call.1} parent=0
    #allocation2 [shape = 'u8[8192]{0}', space=vmem, size = 0x2000, scoped, tag = 'input window, operand 0, single buffered']
    #allocation3 [shape = 's32[1]{0}', space=sflag, size = 0x4, scoped, tag = 'scoped memory for tpu_custom_call.1']
    #allocation4 [shape = 'u8[8192]{0}', space=vmem, size = 0x2000, scoped, tag = 'input window, operand 1, single buffered']
    #allocation5 [shape = 's32[1]{0}', space=sflag, size = 0x4, scoped, tag = 'scoped memory for tpu_custom_call.1']
    #allocation6 [shape = 'u8[8192]{0}', space=vmem, size = 0x2000, scoped, tag = 'input window, operand 2, single buffered']
    %8 = vsyncpa [#allocation3], 0
    %9 = vsyncpa [#allocation5], 0
    // Predicated region
    $region2: #{tpu_custom_call.1} parent=1 // pred_check
      _
    $region3: #{tpu_custom_call.1} parent=1 // pred_check_branch
      %11 = sbr.rel (0) target = $region5
    $region4: #{tpu_custom_call.1} parent=1 // pred_region
      %13 = vsyncadd [#allocation3], 0
      %s14 = sshll.u32 %s0, 4
      %s15 = int_to_ptr.hbm [resolvable:$true] %s14
      %s16 = sshll.u32 [#allocation2], 4
      %s17 = int_to_ptr.vmem [resolvable:$true] %s16
      %22 = dma.hbm_to_vmem [thread:$0]  %s15, 256, %s17, [#allocation3], 128, 128, 8
    $region5: #{tpu_custom_call.1} parent=1 // pred_fallthru
      _
    // Predicated region
    $region6: #{tpu_custom_call.1} parent=1 // pred_check
      _
    $region7: #{tpu_custom_call.1} parent=1 // pred_check_branch
      %24 = sbr.rel (0) target = $region9
    $region8: #{tpu_custom_call.1} parent=1 // pred_region
      %26 = vsyncadd [#allocation5], 0
      %s27 = sshll.u32 %s1, 4
      %s28 = int_to_ptr.hbm [resolvable:$true] %s27
      %s29 = sshll.u32 [#allocation4], 4
      %s30 = int_to_ptr.vmem [resolvable:$true] %s29
      %35 = dma.hbm_to_vmem [thread:$0]  %s28, 256, %s30, [#allocation5], 128, 128, 8
    $region9: #{tpu_custom_call.1} parent=1 // pred_fallthru
      _
    // Predicated region
    $region10: #{tpu_custom_call.1} parent=1 // pred_check
      _
    $region11: #{tpu_custom_call.1} parent=1 // pred_check_branch
      %37 = sbr.rel (0) target = $region13
    $region12: #{tpu_custom_call.1} parent=1 // pred_region
      %39 = vsyncadd [#allocation5], 0
      %s40 = sshll.u32 %s2, 4
      %s41 = int_to_ptr.hbm [resolvable:$true] %s40
      %s42 = sshll.u32 [#allocation6], 4
      %s43 = int_to_ptr.vmem [resolvable:$true] %s42
      %48 = dma.hbm_to_vmem [thread:$0]  %s41, 256, %s43, [#allocation5], 128, 128, 8
    $region13: #{tpu_custom_call.1} parent=1 // pred_fallthru
      _
    // Predicated region
    $region14: #{tpu_custom_call.1} parent=1 // pred_check
      _
    $region15: #{tpu_custom_call.1} parent=1 // pred_check_branch
      %50 = sbr.rel (0) target = $region17
    $region16: #{tpu_custom_call.1} parent=1 // pred_region
      %52 = dma.done [#allocation3], 256
    $region17: #{tpu_custom_call.1} parent=1 // pred_fallthru
      _
    // Predicated region
    $region18: #{tpu_custom_call.1} parent=1 // pred_check
      _
    $region19: #{tpu_custom_call.1} parent=1 // pred_check_branch
      %54 = sbr.rel (0) target = $region21
    $region20: #{tpu_custom_call.1} parent=1 // pred_region
      %56 = dma.done [#allocation5], 256
    $region21: #{tpu_custom_call.1} parent=1 // pred_fallthru
      _
    // Predicated region
    $region22: #{tpu_custom_call.1} parent=1 // pred_check
      _
    $region23: #{tpu_custom_call.1} parent=1 // pred_check_branch
      %58 = sbr.rel (0) target = $region25
    $region24: #{tpu_custom_call.1} parent=1 // pred_region
      %60 = dma.done [#allocation5], 256
    $region25: #{tpu_custom_call.1} parent=1 // pred_fallthru
      _
    %v61 = vld [vmem:[#allocation2] sm:$0xff]
    %v62 = vld [vmem:[#allocation2 + $0x8] sm:$0xff]
    %v63 = vld [vmem:[#allocation4] sm:$0xff]
    %v64 = vld [vmem:[#allocation4 + $0x8] sm:$0xff]
    %v65 = vld [vmem:[#allocation6] sm:$0xff]
    %v66 = vld [vmem:[#allocation6 + $0x8] sm:$0xff]
    %v67 = vmul.f32 %v61, %v63
    %v68 = vmul.f32 %v62, %v64
    %v69 = vmul.f32 %v67, %v65
    %v70 = vmul.f32 %v68, %v66
    %vm71 = vcmask 261120
    %v72 = vsel %vm71, %v69, 0.0
    %73 = vadd.xlane.f32.xlu0 %v72
    %v74 = vpop.xlane.xlu0 %73
    %v75 = vsel %vm71, %v70, 0.0
    %76 = vadd.xlane.f32.xlu0 %v75
    %v77 = vpop.xlane.xlu0 %76
    %vm78 = vcmask 7168
    %79 = vst.msk [vmem:[%s3] sm:$0xff] %vm78, %v74
    %80 = vst.msk [vmem:[%s3 + $0x8] sm:$0xff] %vm78, %v77
    // Predicated region
    $region26: #{tpu_custom_call.1} parent=1 // pred_check
      _
    $region27: #{tpu_custom_call.1} parent=1 // pred_check_branch
      %82 = sbr.rel (0) target = $region29
    $region28: #{tpu_custom_call.1} parent=1 // pred_region
      _
    $region29: #{tpu_custom_call.1} parent=1 // pred_fallthru
      _
    // Predicated region
    $region30: #{tpu_custom_call.1} parent=1 // pred_check
      _
    $region31: #{tpu_custom_call.1} parent=1 // pred_check_branch
      %84 = sbr.rel (0) target = $region33
    $region32: #{tpu_custom_call.1} parent=1 // pred_region
      _
    $region33: #{tpu_custom_call.1} parent=1 // pred_fallthru
      _
    %85 = vsyncpa [#allocation3], 1
    %86 = vsyncpa [#allocation5], 1

</llo_original>
